<compile_context>
chip_gen: v7x
topology: tpu7x:2x2x1
jax: 0.10.0
libtpu: 0.0.40
codegen_flags: <defaults>
</compile_context>

<pallas_src>
import math
from functools import partial

import jax
import jax.numpy as jnp
from jax.experimental import pallas as pl
from jax.experimental.pallas import tpu as pltpu

EPS = 1e-5
_LANE = 128
_STD_LANE = 64          # std lives in lanes [64,128) of the stats slab; mu in [0,64)


# ------------------------------ tiling helpers ------------------------------
def _round_up(x, m):
    return (x + m - 1) // m * m


_VMEM_BUDGET = None


def _vmem_budget_bytes():
    """Generation-aware VMEM tile budget (~3/4 of per-core capacity)."""
    global _VMEM_BUDGET
    if _VMEM_BUDGET is None:
        try:
            cap = int(pltpu.get_tpu_info().vmem_capacity_bytes)
        except Exception:
            cap = 64 * 1024 * 1024          # conservative fallback (v7x per-TC)
        _VMEM_BUDGET = max(32 * 1024 * 1024, (cap * 3) // 4)
    return _VMEM_BUDGET


def _choose_tiles(R, d_model, d_hidden):
    """Row tile (tm), padded rows, hidden tile (tn), padded hidden width.
    Tiles are shrunk until the worst-case double-buffered footprint of both
    kernels fits the generation-aware VMEM budget."""
    budget = _vmem_budget_bytes()
    tn = min(1024, _round_up(d_hidden, _LANE))
    # bf16 pre_acts output -> row tile must be a multiple of 16 (sublane packing)
    tm = min(512, _round_up(max(R, 16), 16))

    def fits(tm_, tn_):
        enc = (2 * tm_ * d_model * 4          # x input blocks (double-buffered)
               + 2 * d_model * tn_ * 2        # w_enc blocks (bf16)
               + 2 * tm_ * tn_ * 2            # pre_acts output blocks (bf16)
               + 2 * tm_ * _LANE * 4          # stats output blocks
               + tm_ * d_model * 2            # cached xn scratch (bf16)
               + 2 * (tn_ + d_model) * 4)     # biases
        dec = (2 * tm_ * tn_ * 2              # latent blocks (bf16)
               + 2 * tn_ * d_model * 2        # w_dec blocks (bf16)
               + 2 * tm_ * d_model * 4        # output (accumulator) blocks (f32)
               + 2 * tm_ * _LANE * 4          # stats blocks
               + 2 * d_model * 4)             # b_pre
        return max(enc, dec) <= budget

    while not fits(tm, tn) and tn > _LANE:
        tn = max(_LANE, (tn // 2 // _LANE) * _LANE)
    while not fits(tm, tn) and tm > 16:
        tm = max(16, (tm // 2 // 16) * 16)

    R_pad = _round_up(R, tm)
    H_pad = _round_up(d_hidden, tn)
    return tm, R_pad, tn, H_pad


def _pad_params(params, H_pad):
    """bf16 weights padded to H_pad. Padded b_enc lanes get -1e30 so top-k never
    selects a padding column (its latent is 0 either way)."""
    d_model, d_hidden = params["w_enc"].shape
    w_enc = jnp.pad(params["w_enc"].astype(jnp.bfloat16), ((0, 0), (0, H_pad - d_hidden)))
    w_dec = jnp.pad(params["w_dec"].astype(jnp.bfloat16), ((0, H_pad - d_hidden), (0, 0)))
    b_enc = jnp.pad(params["b_enc"].astype(jnp.float32), (0, H_pad - d_hidden),
                    constant_values=-1e30)
    b_pre = params["b_pre"].astype(jnp.float32)
    return w_enc, w_dec, b_enc, b_pre


# ------------------------------ Pallas kernels ------------------------------
def _encoder_kernel(x_ref, w_enc_ref, b_enc_ref, b_pre_ref, pre_ref, stats_ref, xn_ref):
    j = pl.program_id(1)

    @pl.when(j == 0)
    def _():
        x = x_ref[...].astype(jnp.float32)                  # (tm, d_model)
        tm, d = x.shape
        mu = jnp.mean(x, axis=-1, keepdims=True)            # (tm, 1)
        xc = x - mu
        # torch.Tensor.std() is the unbiased (ddof=1) estimator
        var = jnp.sum(xc * xc, axis=-1, keepdims=True) * (1.0 / (d - 1))
        std = jnp.sqrt(var)
        xn = xc / (std + EPS) - b_pre_ref[...]               # broadcast (1, d_model)
        xn_ref[...] = xn.astype(jnp.bfloat16)                # cache for all hidden tiles
        # lane-dense stats slab: lanes [0,64) = mu, lanes [64,128) = std
        lane = jax.lax.broadcasted_iota(jnp.int32, (tm, _LANE), 1)
        stats_ref[...] = jnp.where(lane < _STD_LANE,
                                   jnp.broadcast_to(mu, (tm, _LANE)),
                                   jnp.broadcast_to(std, (tm, _LANE)))

    # bf16 MXU operands, f32 accumulation; xn read from the cached scratch
    pre = jnp.dot(xn_ref[...], w_enc_ref[...], preferred_element_type=jnp.float32)
    pre_ref[...] = (pre + b_enc_ref[...]).astype(pre_ref.dtype)   # (tm, tn) bf16


def _decoder_kernel(lat_ref, w_dec_ref, b_pre_ref, stats_ref, out_ref):
    kk = pl.program_id(1)

    @pl.when(kk == 0)
    def _():
        out_ref[...] = jnp.zeros_like(out_ref)

    # accumulate directly into the f32 output block (its index is constant over kk)
    out_ref[...] += jnp.dot(lat_ref[...].astype(jnp.bfloat16), w_dec_ref[...],
                            preferred_element_type=jnp.float32)

    @pl.when(kk == pl.num_programs(1) - 1)
    def _():
        mu = stats_ref[:, 0:1]
        std = stats_ref[:, _STD_LANE:_STD_LANE + 1]
        out_ref[...] = ((out_ref[...] + b_pre_ref[...]) * std + mu).astype(out_ref.dtype)


# ------------------------------ Pallas wrappers -----------------------------
def sae_encode(x_pad, w_enc_p, b_enc_p, b_pre, *, tm, tn):
    """x_pad: (R_pad, d_model) f32; w_enc_p: (d_model, H_pad) bf16.
    Returns pre_acts (R_pad, H_pad) bf16 and stats (R_pad, 128) f32 (mu|std)."""
    R_pad, d_model = x_pad.shape
    H_pad = w_enc_p.shape[1]
    grid = (R_pad // tm, H_pad // tn)
    out_shapes = (
        jax.ShapeDtypeStruct((R_pad, H_pad), jnp.bfloat16),
        jax.ShapeDtypeStruct((R_pad, _LANE), jnp.float32),
    )
    return pl.pallas_call(
        _encoder_kernel,
        out_shape=out_shapes,
        grid_spec=pltpu.PrefetchScalarGridSpec(
            num_scalar_prefetch=0,
            grid=grid,
            in_specs=[
                pl.BlockSpec((tm, d_model), lambda i, j: (i, 0)),
                pl.BlockSpec((d_model, tn), lambda i, j: (0, j)),
                pl.BlockSpec((1, tn), lambda i, j: (0, j)),
                pl.BlockSpec((1, d_model), lambda i, j: (0, 0)),
            ],
            out_specs=[
                pl.BlockSpec((tm, tn), lambda i, j: (i, j)),
                pl.BlockSpec((tm, _LANE), lambda i, j: (i, 0)),
            ],
            scratch_shapes=[pltpu.VMEM((tm, d_model), jnp.bfloat16)],
        ),
        compiler_params=pltpu.CompilerParams(
            # hidden axis must stay sequential (innermost) so the xn cache written
            # at j==0 is valid for every j of the same row tile
            dimension_semantics=("parallel", "arbitrary"),
            vmem_limit_bytes=_vmem_budget_bytes()),
    )(x_pad, w_enc_p, b_enc_p[None, :], b_pre[None, :])


def sae_decode(latents_p, w_dec_p, b_pre, stats_p, *, tm, tk):
    """latents_p: (R_pad, H_pad) bf16; w_dec_p: (H_pad, d_model) bf16;
    stats_p: (R_pad, 128) f32 (mu|std). Returns recons (R_pad, d_model) f32."""
    R_pad, H_pad = latents_p.shape
    d_model = w_dec_p.shape[1]
    grid = (R_pad // tm, H_pad // tk)
    return pl.pallas_call(
        _decoder_kernel,
        out_shape=jax.ShapeDtypeStruct((R_pad, d_model), jnp.float32),
        grid_spec=pltpu.PrefetchScalarGridSpec(
            num_scalar_prefetch=0,
            grid=grid,
            in_specs=[
                pl.BlockSpec((tm, tk), lambda i, kk: (i, kk)),
                pl.BlockSpec((tk, d_model), lambda i, kk: (kk, 0)),
                pl.BlockSpec((1, d_model), lambda i, kk: (0, 0)),
                pl.BlockSpec((tm, _LANE), lambda i, kk: (i, 0)),
            ],
            out_specs=pl.BlockSpec((tm, d_model), lambda i, kk: (i, 0)),
        ),
        compiler_params=pltpu.CompilerParams(
            dimension_semantics=("parallel", "arbitrary"),
            vmem_limit_bytes=_vmem_budget_bytes()),
    )(latents_p, w_dec_p, b_pre[None, :], stats_p)


# ------------------------------ JAX glue ------------------------------------
def topk_activation(x, k):
    """Keep top-k (last dim), ReLU them, zero everything else.
    Implemented as a threshold/compare mask (VPU-friendly, no XLA scatter);
    exact ties at the k-th value may keep a few extra entries (value-identical)."""
    vals = jax.lax.top_k(x, k)[0]                        # (..., k) sorted descending
    kth = vals[..., -1:]                                 # k-th largest per row
    mask = x >= kth
    zero = jnp.zeros_like(x)
    return jnp.where(mask, jnp.maximum(x, zero), zero)


@partial(jax.jit, static_argnames=("k",))
def sae_forward(params, stats_last_nonzero, x, *, k, dead_steps_threshold):
    """Traced mirror of SparseAutoencoder.forward.
    Returns (recons, auxk_recons, num_dead, new_stats). auxk_recons is zeros when
    num_dead == 0 (caller maps it to None to match the module's Optional return)."""
    B, E, d_model = x.shape
    d_hidden = params["b_enc"].shape[0]
    R = B * E
    tm, R_pad, tn, H_pad = _choose_tiles(R, d_model, d_hidden)

    w_enc_p, w_dec_p, b_enc_p, b_pre_p = _pad_params(params, H_pad)
    x2d = x.reshape(R, d_model).astype(jnp.float32)
    x_pad = jnp.pad(x2d, ((0, R_pad - R), (0, 0)))

    pre_p, stats_p = sae_encode(x_pad, w_enc_p, b_enc_p, b_pre_p, tm=tm, tn=tn)
    latents_p = topk_activation(pre_p, k)                  # (R_pad, H_pad) bf16

    lat_real = latents_p[:R, :d_hidden]
    all_zero = jnp.all(lat_real == 0, axis=0).astype(stats_last_nonzero.dtype)
    new_stats = stats_last_nonzero * all_zero + 1
    dead_mask = new_stats > dead_steps_threshold
    num_dead = jnp.sum(dead_mask.astype(jnp.int32))

    # TODO(synk): replace this dense decode with a sparse decode (scalar-prefetched
    # top-k indices gathering only k rows of w_dec per token) at real SAE widths.
    recons_p = sae_decode(latents_p, w_dec_p, b_pre_p, stats_p, tm=tm, tk=tn)
    recons = recons_p[:R].reshape(B, E, d_model)

    # auxk branch: fixed k_aux = d_model // 2 is equivalent to min(d_model//2, num_dead)
    # because non-dead positions are -inf -> relu -> 0 -> contribute nothing.
    k_aux = min(d_model // 2, d_hidden)
    dead_mask_p = jnp.pad(dead_mask, (0, H_pad - d_hidden))

    def _aux_branch(_):
        aux_lat = jnp.where(dead_mask_p[None, :], pre_p, -jnp.inf).astype(pre_p.dtype)
        aux_acts = topk_activation(aux_lat, k_aux)
        aux_p = sae_decode(aux_acts, w_dec_p, b_pre_p, stats_p, tm=tm, tk=tn)
        return aux_p[:R].reshape(B, E, d_model)

    auxk_recons = jax.lax.cond(num_dead > 0, _aux_branch,
                               lambda _: jnp.zeros((B, E, d_model), jnp.float32), None)
    return recons, auxk_recons, num_dead, new_stats


# ---------------------------------- main -------------------------------------
if __name__ == "__main__":
    B, E = 2, 8
    d_model, d_hidden = 64, 256
    k = 32
    batch_size = 256
    dead_steps_threshold = 2000 / batch_size
    R = B * E

    key = jax.random.PRNGKey(0)
    k_w, k_x = jax.random.split(key)

    # Deterministic init mimicking kaiming_uniform_(a=sqrt(5)): bound = 1/sqrt(fan_in);
    # w_dec = w_enc.T, column-normalized (dim=0).
    bound = 1.0 / math.sqrt(d_hidden)
    w_enc = jax.random.uniform(k_w, (d_model, d_hidden),
                               minval=-bound, maxval=bound, dtype=jnp.float32)
    w_dec = w_enc.T
    w_dec = w_dec / jnp.linalg.norm(w_dec, axis=0, keepdims=True)
    params = {
        "w_enc": w_enc,
        "w_dec": w_dec,
        "b_enc": jnp.zeros((d_hidden,), jnp.float32),
        "b_pre": jnp.zeros((d_model,), jnp.float32),
    }
    stats_last_nonzero = jnp.zeros((d_hidden,), jnp.int32)
    x = jax.random.normal(k_x, (B, E, d_model), dtype=jnp.float32)

    # ---- full forward (jitted, auxk branch fully traced) ----
    recons, auxk_full, num_dead, new_stats = sae_forward(
        params, stats_last_nonzero, x, k=k, dead_steps_threshold=dead_steps_threshold)
    jax.block_until_ready((recons, auxk_full, num_dead, new_stats))
    num_dead_host = int(num_dead)                          # host-level only (outside jit)
    auxk_out = auxk_full if num_dead_host > 0 else None    # mirror module's Optional return
    assert recons.shape == (B, E, d_model)
    assert num_dead_host == 0 and auxk_out is None

    # ---- kernel-vs-reference checks (numerics-matched: bf16 MXU operands) ----
    tm, R_pad, tn, H_pad = _choose_tiles(R, d_model, d_hidden)
    w_enc_p, w_dec_p, b_enc_p, b_pre_p = _pad_params(params, H_pad)
    x2d = x.reshape(R, d_model).astype(jnp.float32)
    x_pad = jnp.pad(x2d, ((0, R_pad - R), (0, 0)))

    pre_p, stats_p = sae_encode(x_pad, w_enc_p, b_enc_p, b_pre_p, tm=tm, tn=tn)
    pre_k = pre_p[:R, :d_hidden].astype(jnp.float32)
    mu_k = stats_p[:R, 0:1]
    std_k = stats_p[:R, _STD_LANE:_STD_LANE + 1]

    mu_r = jnp.mean(x2d, axis=-1, keepdims=True)
    xc = x2d - mu_r
    std_r = jnp.sqrt(jnp.sum(xc * xc, axis=-1, keepdims=True) / (d_model - 1))
    xn_r = xc / (std_r + EPS) - params["b_pre"]
    pre_r = jnp.dot(xn_r.astype(jnp.bfloat16), params["w_enc"].astype(jnp.bfloat16),
                    preferred_element_type=jnp.float32) + params["b_enc"]
    assert jnp.allclose(mu_k, mu_r, rtol=1e-5, atol=1e-5), "encoder mu mismatch"
    assert jnp.allclose(std_k, std_r, rtol=1e-5, atol=1e-5), "encoder std mismatch"
    assert jnp.allclose(pre_k, pre_r, rtol=2e-2, atol=2e-2), "encoder pre_acts mismatch"

    latents_p = topk_activation(pre_p, k)
    rec_k = sae_decode(latents_p, w_dec_p, b_pre_p, stats_p, tm=tm, tk=tn)[:R]
    rec_r = jnp.dot(latents_p[:R, :d_hidden].astype(jnp.bfloat16),
                    params["w_dec"].astype(jnp.bfloat16),
                    preferred_element_type=jnp.float32) + params["b_pre"]
    rec_r = rec_r * std_r + mu_r
    assert jnp.allclose(rec_k, rec_r, rtol=2e-2, atol=2e-2), "decoder recons mismatch"
    assert jnp.allclose(recons.reshape(R, d_model), rec_k, rtol=1e-3, atol=1e-3), \
        "full forward vs piecewise kernels mismatch"

    # ---- exercise the auxk (dead-neuron) path: threshold 0 -> everything "dead" ----
    recons2, auxk2, num_dead2, _ = sae_forward(
        params, new_stats, x, k=k, dead_steps_threshold=0.0)
    jax.block_until_ready((recons2, auxk2, num_dead2))
    assert int(num_dead2) == d_hidden
    assert auxk2.shape == (B, E, d_model)
    assert bool(jnp.all(jnp.isfinite(auxk2)))

    print("KERNEL_OK")
</pallas_src>

<mosaic_0001>
module attributes {stable_mosaic.version = 11 : i64} {
  func.func @_encoder_kernel(%arg0: i32, %arg1: i32, %arg2: memref<16x64xf32, #tpu.memory_space<vmem>>, %arg3: memref<64x256xbf16, #tpu.memory_space<vmem>>, %arg4: memref<1x256xf32, #tpu.memory_space<vmem>>, %arg5: memref<1x64xf32, #tpu.memory_space<vmem>>, %arg6: memref<16x256xbf16, #tpu.memory_space<vmem>>, %arg7: memref<16x128xf32, #tpu.memory_space<vmem>>, %arg8: memref<16x64xbf16, #tpu.memory_space<vmem>>) attributes {dimension_semantics = [#tpu.dimension_semantics<parallel>, #tpu.dimension_semantics<arbitrary>], iteration_bounds = array<i64: 1, 1>, scalar_prefetch = 0 : i64, scratch_operands = 1 : i64, tpu.core_type = #tpu.core_type<tc>, window_params = [{transform_indices = @transform_0, window_bounds = array<i64: 16, 64>}, {transform_indices = @transform_1, window_bounds = array<i64: 64, 256>}, {transform_indices = @transform_2, window_bounds = array<i64: 1, 256>}, {pipeline_mode = #tpu.pipeline_mode<synchronous>, transform_indices = @transform_3, window_bounds = array<i64: 1, 64>}, {transform_indices = @transform_4, window_bounds = array<i64: 16, 256>}, {transform_indices = @transform_5, window_bounds = array<i64: 16, 128>}]} {
    %c0_i32 = arith.constant 0 : i32
    %0 = arith.cmpi eq, %arg1, %c0_i32 : i32
    %1 = arith.extui %0 : i1 to i32
    %c0_i32_0 = arith.constant 0 : i32
    %2 = arith.cmpi ne, %1, %c0_i32_0 : i32
    scf.if %2 {
      %c0_8 = arith.constant 0 : index
      %c0_9 = arith.constant 0 : index
      %11 = vector.load %arg2[%c0_8, %c0_9] : memref<16x64xf32, #tpu.memory_space<vmem>>, vector<16x64xf32>
      %cst_10 = arith.constant dense<0.000000e+00> : vector<16xf32>
      %12 = vector.multi_reduction <add>, %11, %cst_10 [1] : vector<16x64xf32> to vector<16xf32>
      %13 = vector.shape_cast %12 : vector<16xf32> to vector<16x1xf32>
      %cst_11 = arith.constant 6.400000e+01 : f32
      %14 = vector.broadcast %cst_11 : f32 to vector<16x1xf32>
      %15 = arith.divf %13, %14 : vector<16x1xf32>
      %16 = vector.broadcast %15 : vector<16x1xf32> to vector<16x64xf32>
      %17 = arith.subf %11, %16 : vector<16x64xf32>
      %18 = arith.mulf %17, %17 : vector<16x64xf32>
      %cst_12 = arith.constant dense<0.000000e+00> : vector<16xf32>
      %19 = vector.multi_reduction <add>, %18, %cst_12 [1] : vector<16x64xf32> to vector<16xf32>
      %20 = vector.shape_cast %19 : vector<16xf32> to vector<16x1xf32>
      %cst_13 = arith.constant 0.0158730168 : f32
      %21 = vector.broadcast %cst_13 : f32 to vector<16x1xf32>
      %22 = arith.mulf %20, %21 : vector<16x1xf32>
      %23 = math.sqrt %22 : vector<16x1xf32>
      %cst_14 = arith.constant 9.99999974E-6 : f32
      %24 = vector.broadcast %cst_14 : f32 to vector<16x1xf32>
      %25 = arith.addf %23, %24 : vector<16x1xf32>
      %26 = vector.broadcast %25 : vector<16x1xf32> to vector<16x64xf32>
      %27 = arith.divf %17, %26 : vector<16x64xf32>
      %c0_15 = arith.constant 0 : index
      %c0_16 = arith.constant 0 : index
      %28 = vector.load %arg5[%c0_15, %c0_16] : memref<1x64xf32, #tpu.memory_space<vmem>>, vector<1x64xf32>
      %29 = vector.broadcast %28 : vector<1x64xf32> to vector<16x64xf32>
      %30 = arith.subf %27, %29 : vector<16x64xf32>
      %31 = arith.truncf %30 : vector<16x64xf32> to vector<16x64xbf16>
      %c0_17 = arith.constant 0 : index
      %c0_18 = arith.constant 0 : index
      %32 = vector.load %arg8[%c0_17, %c0_18] : memref<16x64xbf16, #tpu.memory_space<vmem>>, vector<16x64xbf16>
      tpu.vector_store %arg8[%c0_17, %c0_18], %31 {strides = array<i32>} : memref<16x64xbf16, #tpu.memory_space<vmem>>, vector<16x64xbf16>,
      %33 = tpu.iota {dimensions = array<i32: 1>} : vector<16x128xi32>
      %c64_i32 = arith.constant 64 : i32
      %34 = vector.broadcast %c64_i32 : i32 to vector<16x128xi32>
      %35 = arith.cmpi slt, %33, %34 : vector<16x128xi32>
      %36 = vector.shape_cast %15 : vector<16x1xf32> to vector<16x1xf32>
      %37 = vector.broadcast %36 : vector<16x1xf32> to vector<16x128xf32>
      %38 = vector.shape_cast %23 : vector<16x1xf32> to vector<16x1xf32>
      %39 = vector.broadcast %38 : vector<16x1xf32> to vector<16x128xf32>
      %40 = arith.select %35, %37, %39 : vector<16x128xi1>, vector<16x128xf32>
      %c0_19 = arith.constant 0 : index
      %c0_20 = arith.constant 0 : index
      %41 = vector.load %arg7[%c0_19, %c0_20] : memref<16x128xf32, #tpu.memory_space<vmem>>, vector<16x128xf32>
      tpu.vector_store %arg7[%c0_19, %c0_20], %40 {strides = array<i32>} : memref<16x128xf32, #tpu.memory_space<vmem>>, vector<16x128xf32>,
    } else {
    }
    %c0 = arith.constant 0 : index
    %c0_1 = arith.constant 0 : index
    %3 = vector.load %arg8[%c0, %c0_1] : memref<16x64xbf16, #tpu.memory_space<vmem>>, vector<16x64xbf16>
    %c0_2 = arith.constant 0 : index
    %c0_3 = arith.constant 0 : index
    %4 = vector.load %arg3[%c0_2, %c0_3] : memref<64x256xbf16, #tpu.memory_space<vmem>>, vector<64x256xbf16>
    %cst = arith.constant dense<0.000000e+00> : vector<16x256xf32>
    %5 = tpu.matmul %3, %4, %cst {dimension_numbers = #tpu.dot_dimension_numbers<[1], [0], [0], [1], [0, 0, 1, 1], [], []>} : vector<16x64xbf16>, vector<64x256xbf16>, vector<16x256xf32> -> vector<16x256xf32>
    %c0_4 = arith.constant 0 : index
    %c0_5 = arith.constant 0 : index
    %6 = vector.load %arg4[%c0_4, %c0_5] : memref<1x256xf32, #tpu.memory_space<vmem>>, vector<1x256xf32>
    %7 = vector.broadcast %6 : vector<1x256xf32> to vector<16x256xf32>
    %8 = arith.addf %5, %7 : vector<16x256xf32>
    %9 = arith.truncf %8 : vector<16x256xf32> to vector<16x256xbf16>
    %c0_6 = arith.constant 0 : index
    %c0_7 = arith.constant 0 : index
    %10 = vector.load %arg6[%c0_6, %c0_7] : memref<16x256xbf16, #tpu.memory_space<vmem>>, vector<16x256xbf16>
    tpu.vector_store %arg6[%c0_6, %c0_7], %9 {strides = array<i32>} : memref<16x256xbf16, #tpu.memory_space<vmem>>, vector<16x256xbf16>,
    return
  }
  func.func @transform_0(%arg0: i32, %arg1: i32) -> (i32, i32) {
    %c0_i32 = arith.constant 0 : i32
    %c0_i32_0 = arith.constant 0 : i32
    return %arg0, %c0_i32 : i32, i32
  }
  func.func @transform_1(%arg0: i32, %arg1: i32) -> (i32, i32) {
    %c0_i32 = arith.constant 0 : i32
    %c0_i32_0 = arith.constant 0 : i32
    return %c0_i32, %arg1 : i32, i32
  }
  func.func @transform_2(%arg0: i32, %arg1: i32) -> (i32, i32) {
    %c0_i32 = arith.constant 0 : i32
    %c0_i32_0 = arith.constant 0 : i32
    return %c0_i32, %arg1 : i32, i32
  }
  func.func @transform_3(%arg0: i32, %arg1: i32) -> (i32, i32) {
    %c0_i32 = arith.constant 0 : i32
    %c0_i32_0 = arith.constant 0 : i32
    %c0_i32_1 = arith.constant 0 : i32
    return %c0_i32, %c0_i32_0 : i32, i32
  }
  func.func @transform_4(%arg0: i32, %arg1: i32) -> (i32, i32) {
    %c0_i32 = arith.constant 0 : i32
    return %arg0, %arg1 : i32, i32
  }
  func.func @transform_5(%arg0: i32, %arg1: i32) -> (i32, i32) {
    %c0_i32 = arith.constant 0 : i32
    %c0_i32_0 = arith.constant 0 : i32
    return %arg0, %c0_i32 : i32, i32
  }
}

module attributes {stable_mosaic.version = 11 : i64} {
  func.func @_decoder_kernel(%arg0: i32, %arg1: i32, %arg2: memref<16x256xbf16, #tpu.memory_space<vmem>>, %arg3: memref<256x64xbf16, #tpu.memory_space<vmem>>, %arg4: memref<1x64xf32, #tpu.memory_space<vmem>>, %arg5: memref<16x128xf32, #tpu.memory_space<vmem>>, %arg6: memref<16x64xf32, #tpu.memory_space<vmem>>) attributes {dimension_semantics = [#tpu.dimension_semantics<parallel>, #tpu.dimension_semantics<arbitrary>], iteration_bounds = array<i64: 1, 1>, scalar_prefetch = 0 : i64, scratch_operands = 0 : i64, tpu.core_type = #tpu.core_type<tc>, window_params = [{transform_indices = @transform_0, window_bounds = array<i64: 16, 256>}, {transform_indices = @transform_1, window_bounds = array<i64: 256, 64>}, {pipeline_mode = #tpu.pipeline_mode<synchronous>, transform_indices = @transform_2, window_bounds = array<i64: 1, 64>}, {transform_indices = @transform_3, window_bounds = array<i64: 16, 128>}, {transform_indices = @transform_4, window_bounds = array<i64: 16, 64>}]} {
    %c0_i32 = arith.constant 0 : i32
    %0 = arith.cmpi eq, %arg1, %c0_i32 : i32
    %1 = arith.extui %0 : i1 to i32
    %c0_i32_0 = arith.constant 0 : i32
    %2 = arith.cmpi ne, %1, %c0_i32_0 : i32
    scf.if %2 {
      %cst_10 = arith.constant 0.000000e+00 : f32
      %12 = vector.broadcast %cst_10 : f32 to vector<16x64xf32>
      %c0_11 = arith.constant 0 : index
      %c0_12 = arith.constant 0 : index
      %13 = vector.load %arg6[%c0_11, %c0_12] : memref<16x64xf32, #tpu.memory_space<vmem>>, vector<16x64xf32>
      tpu.vector_store %arg6[%c0_11, %c0_12], %12 {strides = array<i32>} : memref<16x64xf32, #tpu.memory_space<vmem>>, vector<16x64xf32>,
    } else {
    }
    %c0 = arith.constant 0 : index
    %c0_1 = arith.constant 0 : index
    %3 = vector.load %arg6[%c0, %c0_1] : memref<16x64xf32, #tpu.memory_space<vmem>>, vector<16x64xf32>
    %c0_2 = arith.constant 0 : index
    %c0_3 = arith.constant 0 : index
    %4 = vector.load %arg2[%c0_2, %c0_3] : memref<16x256xbf16, #tpu.memory_space<vmem>>, vector<16x256xbf16>
    %c0_4 = arith.constant 0 : index
    %c0_5 = arith.constant 0 : index
    %5 = vector.load %arg3[%c0_4, %c0_5] : memref<256x64xbf16, #tpu.memory_space<vmem>>, vector<256x64xbf16>
    %cst = arith.constant dense<0.000000e+00> : vector<16x64xf32>
    %6 = tpu.matmul %4, %5, %cst {dimension_numbers = #tpu.dot_dimension_numbers<[1], [0], [0], [1], [0, 0, 1, 1], [], []>} : vector<16x256xbf16>, vector<256x64xbf16>, vector<16x64xf32> -> vector<16x64xf32>
    %7 = arith.addf %3, %6 : vector<16x64xf32>
    %c0_6 = arith.constant 0 : index
    %c0_7 = arith.constant 0 : index
    %8 = vector.load %arg6[%c0_6, %c0_7] : memref<16x64xf32, #tpu.memory_space<vmem>>, vector<16x64xf32>
    tpu.vector_store %arg6[%c0_6, %c0_7], %7 {strides = array<i32>} : memref<16x64xf32, #tpu.memory_space<vmem>>, vector<16x64xf32>,
    %c0_i32_8 = arith.constant 0 : i32
    %9 = arith.cmpi eq, %arg1, %c0_i32_8 : i32
    %10 = arith.extui %9 : i1 to i32
    %c0_i32_9 = arith.constant 0 : i32
    %11 = arith.cmpi ne, %10, %c0_i32_9 : i32
    scf.if %11 {
      %c0_10 = arith.constant 0 : index
      %c0_11 = arith.constant 0 : index
      %12 = vector.load %arg5[%c0_10, %c0_11] : memref<16x128xf32, #tpu.memory_space<vmem>>, vector<16x1xf32>
      %c0_12 = arith.constant 0 : index
      %c64 = arith.constant 64 : index
      %13 = vector.load %arg5[%c0_12, %c64] : memref<16x128xf32, #tpu.memory_space<vmem>>, vector<16x1xf32>
      %c0_13 = arith.constant 0 : index
      %c0_14 = arith.constant 0 : index
      %14 = vector.load %arg6[%c0_13, %c0_14] : memref<16x64xf32, #tpu.memory_space<vmem>>, vector<16x64xf32>
      %c0_15 = arith.constant 0 : index
      %c0_16 = arith.constant 0 : index
      %15 = vector.load %arg4[%c0_15, %c0_16] : memref<1x64xf32, #tpu.memory_space<vmem>>, vector<1x64xf32>
      %16 = vector.broadcast %15 : vector<1x64xf32> to vector<16x64xf32>
      %17 = arith.addf %14, %16 : vector<16x64xf32>
      %18 = vector.broadcast %13 : vector<16x1xf32> to vector<16x64xf32>
      %19 = arith.mulf %17, %18 : vector<16x64xf32>
      %20 = vector.broadcast %12 : vector<16x1xf32> to vector<16x64xf32>
      %21 = arith.addf %19, %20 : vector<16x64xf32>
      %c0_17 = arith.constant 0 : index
      %c0_18 = arith.constant 0 : index
      %22 = vector.load %arg6[%c0_17, %c0_18] : memref<16x64xf32, #tpu.memory_space<vmem>>, vector<16x64xf32>
      tpu.vector_store %arg6[%c0_17, %c0_18], %21 {strides = array<i32>} : memref<16x64xf32, #tpu.memory_space<vmem>>, vector<16x64xf32>,
    } else {
    }
    return
  }
  func.func @transform_0(%arg0: i32, %arg1: i32) -> (i32, i32) {
    %c0_i32 = arith.constant 0 : i32
    return %arg0, %arg1 : i32, i32
  }
  func.func @transform_1(%arg0: i32, %arg1: i32) -> (i32, i32) {
    %c0_i32 = arith.constant 0 : i32
    %c0_i32_0 = arith.constant 0 : i32
    return %arg1, %c0_i32 : i32, i32
  }
  func.func @transform_2(%arg0: i32, %arg1: i32) -> (i32, i32) {
    %c0_i32 = arith.constant 0 : i32
    %c0_i32_0 = arith.constant 0 : i32
    %c0_i32_1 = arith.constant 0 : i32
    return %c0_i32, %c0_i32_0 : i32, i32
  }
  func.func @transform_3(%arg0: i32, %arg1: i32) -> (i32, i32) {
    %c0_i32 = arith.constant 0 : i32
    %c0_i32_0 = arith.constant 0 : i32
    return %arg0, %c0_i32 : i32, i32
  }
  func.func @transform_4(%arg0: i32, %arg1: i32) -> (i32, i32) {
    %c0_i32 = arith.constant 0 : i32
    %c0_i32_0 = arith.constant 0 : i32
    return %arg0, %c0_i32 : i32, i32
  }
}

</mosaic_0001>

<llo_original>
// kernel: sae_forward.2
$region0: #{sae_forward.2}
  #allocation0 [shape = 'u32[]', space=smem, size = 0x4, offset = 0x4, fixed_abs, tag = 'smem constant byte address 0x4 - core index']
  #allocation1 [shape = 'u32[144,128]{1,0:T(1,128)}', space=vmem, size = 0x12000, scoped, tag = 'internal scratch']
  #allocation2 [shape = 'bf16[16,64]{1,0:T(16,128)(2,1)}', space=vmem, size = 0x1000, scoped, tag = 'scratch operand']
  %s0 = inlined_call_operand.vmem [shape: f32[16,64], index: 0, kind: input, shape index: {}]
  %s1 = inlined_call_operand.vmem [shape: bf16[64,256], index: 1, kind: input, shape index: {}]
  %s2 = inlined_call_operand.vmem [shape: f32[1,256], index: 2, kind: input, shape index: {}]
  %s3 = inlined_call_operand.vmem [shape: f32[1,64], index: 3, kind: input, shape index: {}]
  %s4 = inlined_call_operand.vmem [shape: bf16[16,256], index: 4, kind: output, shape index: {0}]
  %s5 = inlined_call_operand.vmem [shape: f32[16,128], index: 5, kind: output, shape index: {1}]
  %6 = xla_tuple %s4, %s5
  %s7 = sld [smem:[#allocation0]]
  $region38: #{sae_forward.2} parent=0
    _
  %s9 = ssub.s32 1, %s7
  %s10 = scalar_select 0, %s9, %s7
  // Predicated region
  $region2: #{sae_forward.2} parent=0 // pred_check
    _
  $region3: #{sae_forward.2} parent=0 // pred_check_branch
    %12 = sbr.rel (0) target = $region5
  $region4: #{sae_forward.2} parent=0 // pred_region
    _
  $region5: #{sae_forward.2} parent=0 // pred_fallthru
    _
  // Predicated region
  $region6: #{sae_forward.2} parent=0 // pred_check
    _
  $region7: #{sae_forward.2} parent=0 // pred_check_branch
    %14 = sbr.rel (0) target = $region9
  $region8: #{sae_forward.2} parent=0 // pred_region
    _
  $region9: #{sae_forward.2} parent=0 // pred_fallthru
    _
  // Predicated region
  $region10: #{sae_forward.2} parent=0 // pred_check
    _
  $region11: #{sae_forward.2} parent=0 // pred_check_branch
    %16 = sbr.rel (0) target = $region13
  $region12: #{sae_forward.2} parent=0 // pred_region
    _
  $region13: #{sae_forward.2} parent=0 // pred_fallthru
    _
  // Predicated region
  $region14: #{sae_forward.2} parent=0 // pred_check
    _
  $region15: #{sae_forward.2} parent=0 // pred_check_branch
    %18 = sbr.rel (0) target = $region17
  $region16: #{sae_forward.2} parent=0 // pred_region
    _
  $region17: #{sae_forward.2} parent=0 // pred_fallthru
    _
  %p20 = scmp.eq.s32.totalorder 0, 0
  // Predicated region
  $region18: #{sae_forward.2} parent=0 // pred_check
    %p21 = pneg %p20
  $region19: #{sae_forward.2} parent=0 // pred_check_branch
    %23 = sbr.rel (%p21) target = $region21
  $region20: #{sae_forward.2} parent=0 // pred_region
    %v24 = vld [vmem:[%s0] sm:$0xff]
    %v25 = vld [vmem:[%s0 + $0x8] sm:$0xff]
    %vm26 = vcmask 523264
    %v27 = vsel %vm26, %v24, 0.0
    %28 = vadd.xlane.f32.xlu0 %v27
    %v29 = vpop.xlane.xlu0 %28
    %v30 = vsel %vm26, %v25, 0.0
    %31 = vadd.xlane.f32.xlu0 %v30
    %v32 = vpop.xlane.xlu0 %31
    %v33 = vrcp.pop 64.0
    %v34 = vmul.f32 %v29, %v33
    %v35 = vmul.f32 %v32, %v33
    %v36 = vsub.f32 %v24, %v34
    %v37 = vsub.f32 %v25, %v35
    %v38 = vmul.f32 %v36, %v36
    %v39 = vmul.f32 %v37, %v37
    %v40 = vsel %vm26, %v38, 0.0
    %41 = vadd.xlane.f32.xlu0 %v40
    %v42 = vpop.xlane.xlu0 %41
    %v43 = vsel %vm26, %v39, 0.0
    %44 = vadd.xlane.f32.xlu0 %v43
    %v45 = vpop.xlane.xlu0 %44
    %v46 = vmul.f32 %v42, 0.015873017
    %v47 = vmul.f32 %v45, 0.015873017
    %v48 = vrsqrt.pop %v46
    %v49 = vmul.f32 %v46, %v48
    %vm50 = vcmp.eq.f32.partialorder %v46, inf
    %v51 = vsel %vm50, %v46, %v49
    %vm52 = vcmp.eq.f32.partialorder %v46, 0.0
    %v53 = vand.u32 %v46, 2147483648
    %v54 = vsel %vm52, %v53, %v51
    %v55 = vrsqrt.pop %v47
    %v56 = vmul.f32 %v47, %v55
    %vm57 = vcmp.eq.f32.partialorder %v47, inf
    %v58 = vsel %vm57, %v47, %v56
    %vm59 = vcmp.eq.f32.partialorder %v47, 0.0
    %v60 = vand.u32 %v47, 2147483648
    %v61 = vsel %vm59, %v60, %v58
    %v62 = vadd.f32 %v54, 1e-05
    %v63 = vadd.f32 %v61, 1e-05
    %v64 = vrcp.pop %v62
    %v65 = vmul.f32 %v36, %v64
    %v66 = vrcp.pop %v63
    %v67 = vmul.f32 %v37, %v66
    %v68 = vld [vmem:[%s3] sm:$0x1]
    %v70 = vlaneseq
    %v71 = vshrl.u32 %v70, 7
    %v72 = vsub.s32 0, %v71
    %v73 = vrot.slane %v68, %v72
    %v75 = vsub.f32 %v65, %v73
    %v76 = vsub.f32 %v67, %v73
    %v77 = vpack.c.bf16 %v76, %v75
    %78 = vst.msk [vmem:[#allocation2] sm:$0xff] %vm26, %v77
    %v79 = vlaneseq
    %v80 = vand.u32 %v79, 127
    %vm81 = vcmp.lt.s32.totalorder %v80, 64
    %v82 = vsel %vm81, %v34, %v54
    %v83 = vsel %vm81, %v35, %v61
    %84 = vst [vmem:[%s5] sm:$0xff] %v82
    %85 = vst [vmem:[%s5 + $0x8] sm:$0xff] %v83
  $region21: #{sae_forward.2} parent=0 // pred_fallthru
    _
  %v86 = vld [vmem:[#allocation2] sm:$0xff]
  %v87 = vld [vmem:[%s1] sm:$0xff]
  %v88 = vld [vmem:[%s1 + $0x8] sm:$0xff]
  %v89 = vld [vmem:[%s1 + $0x10] sm:$0xff]
  %v90 = vld [vmem:[%s1 + $0x18] sm:$0xff]
  %v91 = vld [vmem:[%s1 + $0x20] sm:$0xff]
  %v92 = vld [vmem:[%s1 + $0x28] sm:$0xff]
  %v93 = vld [vmem:[%s1 + $0x30] sm:$0xff]
  %v94 = vld [vmem:[%s1 + $0x38] sm:$0xff]
  %v95 = vld [vmem:[%s2] sm:$0x3]
  %v97 = vlaneseq
  %v98 = vshrl.u32 %v97, 7
  %v99 = vsub.s32 0, %v98
  %v100 = vrot.slane %v95, %v99
  %v101 = vlaneseq
  %v102 = vshrl.u32 %v101, 7
  %v103 = vsub.s32 1, %v102
  %v104 = vrot.slane %v95, %v103
  %v115 = vunpack.c.l.b16 %v87
  %v116 = vunpack.c.h.b16 %v87
  %v117 = vunpack.c.l.b16 %v88
  %v118 = vunpack.c.h.b16 %v88
  %v119 = vunpack.c.l.b16 %v89
  %v120 = vunpack.c.h.b16 %v89
  %v121 = vunpack.c.l.b16 %v90
  %v122 = vunpack.c.h.b16 %v90
  %v123 = vunpack.c.l.b16 %v91
  %v124 = vunpack.c.h.b16 %v91
  %v125 = vunpack.c.l.b16 %v92
  %v126 = vunpack.c.h.b16 %v92
  %v127 = vunpack.c.l.b16 %v93
  %v128 = vunpack.c.h.b16 %v93
  %v129 = vunpack.c.l.b16 %v94
  %v130 = vunpack.c.h.b16 %v94
  %v131 = vpack.c.b16 %v117, %v115
  %v132 = vpack.c.b16 %v118, %v116
  %v133 = vpack.c.b16 %v121, %v119
  %v134 = vpack.c.b16 %v122, %v120
  %v135 = vpack.c.b16 %v125, %v123
  %v136 = vpack.c.b16 %v126, %v124
  %v137 = vpack.c.b16 %v129, %v127
  %v138 = vpack.c.b16 %v130, %v128
  %vm147 = vcmask 523264
  %v149 = vsel %vm147, %v86, 0
  %151 = vmatprep.subr.bf16.mxu0 %v132
  %152 = vmatpush1.bf16.msra.mxu0 %v131
  %153 = vmatprep.subr.bf16.mxu0 %v134
  %154 = vmatpush1.bf16.msra.mxu0 %v133
  %155 = vmatprep.subr.bf16.mxu0 %v136
  %156 = vmatpush1.bf16.msra.mxu0 %v135
  %157 = vmatprep.subr.bf16.mxu0 %v138
  %158 = vmatpush1.bf16.msra.mxu0 %v137
  %159 = vmatprep.subr.bf16.mxu0 0
  %160 = vmatpush1.bf16.msra.mxu0 0
  %161 = vmatprep.subr.bf16.mxu0 0
  %162 = vmatpush1.bf16.msra.mxu0 0
  %163 = vmatprep.subr.bf16.mxu0 0
  %164 = vmatpush1.bf16.msra.mxu0 0
  %165 = vmatprep.subr.bf16.mxu0 0
  %166 = vmatpush1.bf16.msra.mxu0 0
  %167 = vmatprep.subr.bf16.mxu0 0
  %168 = vmatpush1.bf16.msra.mxu0 0
  %169 = vmatprep.subr.bf16.mxu0 0
  %170 = vmatpush1.bf16.msra.mxu0 0
  %171 = vmatprep.subr.bf16.mxu0 0
  %172 = vmatpush1.bf16.msra.mxu0 0
  %173 = vmatprep.subr.bf16.mxu0 0
  %174 = vmatpush1.bf16.msra.mxu0 0
  %175 = vmatprep.subr.bf16.mxu0 0
  %176 = vmatpush1.bf16.msra.mxu0 0
  %177 = vmatprep.subr.bf16.mxu0 0
  %178 = vmatpush1.bf16.msra.mxu0 0
  %179 = vmatprep.subr.bf16.mxu0 0
  %180 = vmatpush1.bf16.msra.mxu0 0
  %181 = vmatprep.subr.bf16.mxu0 0
  %182 = vmatpush1.bf16.msra.mxu0 0
  %183 = vmatprep.mubr.bf16.mxu0 0
  %184 = vmatmul.mubr.bf16.gmra.mrb[0].mxu0 %v149
  %v185 = vpop.f32.mrb[0].mxu0
  %v186 = vadd.f32 %v100, %v185
  %v187 = vpop.f32.mrb[0].mxu0
  %v188 = vadd.f32 %v104, %v187
  %v189 = vpop.f32.mrb[0].mxu0
  %v190 = vadd.f32 %v100, %v189
  %v191 = vpop.f32.mrb[0].mxu0
  %v192 = vadd.f32 %v104, %v191
  %193 = vdwg.mxu0
  %v194 = vpack.c.bf16 %v190, %v186
  %v195 = vpack.c.bf16 %v192, %v188
  %v198 = vunpack.c.l.b16 %v194
  %v199 = vunpack.c.l.b16 %v195
  %v200 = vunpack.c.h.b16 %v194
  %v201 = vunpack.c.h.b16 %v195
  %v202 = vpack.c.b16 %v199, %v198
  %v203 = vpack.c.b16 %v201, %v200
  %206 = vst [vmem:[%s4] sm:$0xff] %v202
  %207 = vst [vmem:[%s4 + $0x8] sm:$0xff] %v203
  // Predicated region
  $region22: #{sae_forward.2} parent=0 // pred_check
    _
  $region23: #{sae_forward.2} parent=0 // pred_check_branch
    %209 = sbr.rel (0) target = $region25
  $region24: #{sae_forward.2} parent=0 // pred_region
    _
  $region25: #{sae_forward.2} parent=0 // pred_fallthru
    _
  // Predicated region
  $region26: #{sae_forward.2} parent=0 // pred_check
    _
  $region27: #{sae_forward.2} parent=0 // pred_check_branch
    %211 = sbr.rel (0) target = $region29
  $region28: #{sae_forward.2} parent=0 // pred_region
    _
  $region29: #{sae_forward.2} parent=0 // pred_fallthru
    _
  // Predicated region
  $region30: #{sae_forward.2} parent=0 // pred_check
    _
  $region31: #{sae_forward.2} parent=0 // pred_check_branch
    %213 = sbr.rel (0) target = $region33
  $region32: #{sae_forward.2} parent=0 // pred_region
    _
  $region33: #{sae_forward.2} parent=0 // pred_fallthru
    _
  // Predicated region
  $region34: #{sae_forward.2} parent=0 // pred_check
    _
  $region35: #{sae_forward.2} parent=0 // pred_check_branch
    %215 = sbr.rel (0) target = $region37
  $region36: #{sae_forward.2} parent=0 // pred_region
    _
  $region37: #{sae_forward.2} parent=0 // pred_fallthru
    _

// kernel: sae_forward.3
$region0: #{sae_forward.3}
  #allocation0 [shape = 'u32[]', space=smem, size = 0x4, offset = 0x4, fixed_abs, tag = 'smem constant byte address 0x4 - core index']
  #allocation1 [shape = 'u32[144,128]{1,0:T(1,128)}', space=vmem, size = 0x12000, scoped, tag = 'internal scratch']
  %s0 = inlined_call_operand.vmem [shape: bf16[16,256], index: 0, kind: input, shape index: {}]
  %s1 = inlined_call_operand.vmem [shape: bf16[256,64], index: 1, kind: input, shape index: {}]
  %s2 = inlined_call_operand.vmem [shape: f32[1,64], index: 2, kind: input, shape index: {}]
  %s3 = inlined_call_operand.vmem [shape: f32[16,128], index: 3, kind: input, shape index: {}]
  %s4 = inlined_call_operand.hbm [shape: f32[16,64], index: 4, kind: output, shape index: {}]
  %s5 = sld [smem:[#allocation0]]
  $region34: #{sae_forward.3} parent=0
    _
  %s7 = ssub.s32 1, %s5
  %s8 = scalar_select 0, %s7, %s5
  $region1: #{sae_forward.3} parent=0
    #allocation2 [shape = 'u8[8192]{0}', space=vmem, size = 0x2000, scoped, tag = 'output window, operand 0, single buffered']
    #allocation3 [shape = 's32[1]{0}', space=sflag, size = 0x4, scoped, tag = 'scoped memory for sae_forward.3']
    %9 = vsyncpa [#allocation3], 0
    // Predicated region
    $region2: #{sae_forward.3} parent=1 // pred_check
      _
    $region3: #{sae_forward.3} parent=1 // pred_check_branch
      %11 = sbr.rel (0) target = $region5
    $region4: #{sae_forward.3} parent=1 // pred_region
      _
    $region5: #{sae_forward.3} parent=1 // pred_fallthru
      _
    // Predicated region
    $region6: #{sae_forward.3} parent=1 // pred_check
      _
    $region7: #{sae_forward.3} parent=1 // pred_check_branch
      %13 = sbr.rel (0) target = $region9
    $region8: #{sae_forward.3} parent=1 // pred_region
      _
    $region9: #{sae_forward.3} parent=1 // pred_fallthru
      _
    // Predicated region
    $region10: #{sae_forward.3} parent=1 // pred_check
      _
    $region11: #{sae_forward.3} parent=1 // pred_check_branch
      %15 = sbr.rel (0) target = $region13
    $region12: #{sae_forward.3} parent=1 // pred_region
      _
    $region13: #{sae_forward.3} parent=1 // pred_fallthru
      _
    // Predicated region
    $region14: #{sae_forward.3} parent=1 // pred_check
      _
    $region15: #{sae_forward.3} parent=1 // pred_check_branch
      %17 = sbr.rel (0) target = $region17
    $region16: #{sae_forward.3} parent=1 // pred_region
      _
    $region17: #{sae_forward.3} parent=1 // pred_fallthru
      _
    %p19 = scmp.eq.s32.totalorder 0, 0
    // Predicated region
    $region18: #{sae_forward.3} parent=1 // pred_check
      %p20 = pneg %p19
    $region19: #{sae_forward.3} parent=1 // pred_check_branch
      %22 = sbr.rel (%p20) target = $region21
    $region20: #{sae_forward.3} parent=1 // pred_region
      %vm23 = vcmask 523264
      %24 = vst.msk [vmem:[#allocation2] sm:$0xff] %vm23, 0.0
      %25 = vst.msk [vmem:[#allocation2 + $0x8] sm:$0xff] %vm23, 0.0
    $region21: #{sae_forward.3} parent=1 // pred_fallthru
      _
    %v26 = vld [vmem:[#allocation2] sm:$0xff]
    %v27 = vld [vmem:[#allocation2 + $0x8] sm:$0xff]
    %v28 = vld [vmem:[%s0] sm:$0xff]
    %v29 = vld [vmem:[%s0 + $0x8] sm:$0xff]
    %v30 = vld [vmem:[%s1] sm:$0xf]
    %v31 = vld [vmem:[%s1 + $0x4] sm:$0xf]
    %v32 = vld [vmem:[%s1 + $0x8] sm:$0xf]
    %v33 = vld [vmem:[%s1 + $0xc] sm:$0xf]
    %v34 = vld [vmem:[%s1 + $0x10] sm:$0xf]
    %v35 = vld [vmem:[%s1 + $0x14] sm:$0xf]
    %v36 = vld [vmem:[%s1 + $0x18] sm:$0xf]
    %v37 = vld [vmem:[%s1 + $0x1c] sm:$0xf]
    %v38 = vld [vmem:[%s1 + $0x20] sm:$0xf]
    %v39 = vld [vmem:[%s1 + $0x24] sm:$0xf]
    %v40 = vld [vmem:[%s1 + $0x28] sm:$0xf]
    %v41 = vld [vmem:[%s1 + $0x2c] sm:$0xf]
    %v42 = vld [vmem:[%s1 + $0x30] sm:$0xf]
    %v43 = vld [vmem:[%s1 + $0x34] sm:$0xf]
    %v44 = vld [vmem:[%s1 + $0x38] sm:$0xf]
    %v45 = vld [vmem:[%s1 + $0x3c] sm:$0xf]
    %v46 = vld [vmem:[%s1 + $0x40] sm:$0xf]
    %v47 = vld [vmem:[%s1 + $0x44] sm:$0xf]
    %v48 = vld [vmem:[%s1 + $0x48] sm:$0xf]
    %v49 = vld [vmem:[%s1 + $0x4c] sm:$0xf]
    %v50 = vld [vmem:[%s1 + $0x50] sm:$0xf]
    %v51 = vld [vmem:[%s1 + $0x54] sm:$0xf]
    %v52 = vld [vmem:[%s1 + $0x58] sm:$0xf]
    %v53 = vld [vmem:[%s1 + $0x5c] sm:$0xf]
    %v54 = vld [vmem:[%s1 + $0x60] sm:$0xf]
    %v55 = vld [vmem:[%s1 + $0x64] sm:$0xf]
    %v56 = vld [vmem:[%s1 + $0x68] sm:$0xf]
    %v57 = vld [vmem:[%s1 + $0x6c] sm:$0xf]
    %v58 = vld [vmem:[%s1 + $0x70] sm:$0xf]
    %v59 = vld [vmem:[%s1 + $0x74] sm:$0xf]
    %v60 = vld [vmem:[%s1 + $0x78] sm:$0xf]
    %v61 = vld [vmem:[%s1 + $0x7c] sm:$0xf]
    %v64 = vunpack.c.l.b16 %v28
    %v65 = vunpack.c.h.b16 %v28
    %v66 = vunpack.c.l.b16 %v29
    %v67 = vunpack.c.h.b16 %v29
    %v68 = vpack.c.b16 %v66, %v64
    %v69 = vpack.c.b16 %v67, %v65
    %v104 = vunpack.c.l.b16 %v30
    %v105 = vunpack.c.l.b16 %v31
    %v106 = vunpack.c.l.b16 %v32
    %v107 = vunpack.c.l.b16 %v33
    %v108 = vunpack.c.l.b16 %v34
    %v109 = vunpack.c.l.b16 %v35
    %v110 = vunpack.c.l.b16 %v36
    %v111 = vunpack.c.l.b16 %v37
    %v112 = vunpack.c.l.b16 %v38
    %v113 = vunpack.c.l.b16 %v39
    %v114 = vunpack.c.l.b16 %v40
    %v115 = vunpack.c.l.b16 %v41
    %v116 = vunpack.c.l.b16 %v42
    %v117 = vunpack.c.l.b16 %v43
    %v118 = vunpack.c.l.b16 %v44
    %v119 = vunpack.c.l.b16 %v45
    %v120 = vunpack.c.l.b16 %v46
    %v121 = vunpack.c.l.b16 %v47
    %v122 = vunpack.c.l.b16 %v48
    %v123 = vunpack.c.l.b16 %v49
    %v124 = vunpack.c.l.b16 %v50
    %v125 = vunpack.c.l.b16 %v51
    %v126 = vunpack.c.l.b16 %v52
    %v127 = vunpack.c.l.b16 %v53
    %v128 = vunpack.c.l.b16 %v54
    %v129 = vunpack.c.l.b16 %v55
    %v130 = vunpack.c.l.b16 %v56
    %v131 = vunpack.c.l.b16 %v57
    %v132 = vunpack.c.l.b16 %v58
    %v133 = vunpack.c.l.b16 %v59
    %v134 = vunpack.c.l.b16 %v60
    %v135 = vunpack.c.l.b16 %v61
    %v136 = vpack.c.b16 %v105, %v104
    %v137 = vpack.c.b16 %v107, %v106
    %v138 = vpack.c.b16 %v109, %v108
    %v139 = vpack.c.b16 %v111, %v110
    %v140 = vpack.c.b16 %v113, %v112
    %v141 = vpack.c.b16 %v115, %v114
    %v142 = vpack.c.b16 %v117, %v116
    %v143 = vpack.c.b16 %v119, %v118
    %v144 = vpack.c.b16 %v121, %v120
    %v145 = vpack.c.b16 %v123, %v122
    %v146 = vpack.c.b16 %v125, %v124
    %v147 = vpack.c.b16 %v127, %v126
    %v148 = vpack.c.b16 %v129, %v128
    %v149 = vpack.c.b16 %v131, %v130
    %v150 = vpack.c.b16 %v133, %v132
    %v151 = vpack.c.b16 %v135, %v134
    %168 = vmatprep.subr.bf16.mxu0 0
    %169 = vmatpush1.bf16.msra.mxu0 %v136
    %170 = vmatprep.subr.bf16.mxu0 0
    %171 = vmatpush1.bf16.msra.mxu0 %v137
    %172 = vmatprep.subr.bf16.mxu0 0
    %173 = vmatpush1.bf16.msra.mxu0 %v138
    %174 = vmatprep.subr.bf16.mxu0 0
    %175 = vmatpush1.bf16.msra.mxu0 %v139
    %176 = vmatprep.subr.bf16.mxu0 0
    %177 = vmatpush1.bf16.msra.mxu0 %v140
    %178 = vmatprep.subr.bf16.mxu0 0
    %179 = vmatpush1.bf16.msra.mxu0 %v141
    %180 = vmatprep.subr.bf16.mxu0 0
    %181 = vmatpush1.bf16.msra.mxu0 %v142
    %182 = vmatprep.subr.bf16.mxu0 0
    %183 = vmatpush1.bf16.msra.mxu0 %v143
    %184 = vmatprep.subr.bf16.mxu0 0
    %185 = vmatpush1.bf16.msra.mxu0 %v144
    %186 = vmatprep.subr.bf16.mxu0 0
    %187 = vmatpush1.bf16.msra.mxu0 %v145
    %188 = vmatprep.subr.bf16.mxu0 0
    %189 = vmatpush1.bf16.msra.mxu0 %v146
    %190 = vmatprep.subr.bf16.mxu0 0
    %191 = vmatpush1.bf16.msra.mxu0 %v147
    %192 = vmatprep.subr.bf16.mxu0 0
    %193 = vmatpush1.bf16.msra.mxu0 %v148
    %194 = vmatprep.subr.bf16.mxu0 0
    %195 = vmatpush1.bf16.msra.mxu0 %v149
    %196 = vmatprep.subr.bf16.mxu0 0
    %197 = vmatpush1.bf16.msra.mxu0 %v150
    %198 = vmatprep.subr.bf16.mxu0 0
    %199 = vmatpush1.bf16.msra.mxu0 %v151
    %200 = vmatprep.mubr.bf16.mxu0 %v69
    %201 = vmatmul.mubr.bf16.gmra.mrb[0].mxu0 %v68
    %v202 = vpop.f32.mrb[0].mxu0
    %v203 = vadd.f32 0.0, %v202
    %v204 = vpop.f32.mrb[0].mxu0
    %v205 = vpop.f32.mrb[0].mxu0
    %v206 = vadd.f32 0.0, %v205
    %v207 = vpop.f32.mrb[0].mxu0
    %208 = vdwg.mxu0
    %v209 = vadd.f32 %v26, %v203
    %v210 = vadd.f32 %v27, %v206
    %vm211 = vcmask 523264
    %212 = vst.msk [vmem:[#allocation2] sm:$0xff] %vm211, %v209
    %213 = vst.msk [vmem:[#allocation2 + $0x8] sm:$0xff] %vm211, %v210
    // Predicated region
    $region22: #{sae_forward.3} parent=1 // pred_check
      %p214 = pneg %p19
    $region23: #{sae_forward.3} parent=1 // pred_check_branch
      %216 = sbr.rel (%p214) target = $region25
    $region24: #{sae_forward.3} parent=1 // pred_region
      %v217 = vld [vmem:[%s3] sm:$0xff]
      %v218 = vld [vmem:[%s3 + $0x8] sm:$0xff]
      %v219 = vld [vmem:[#allocation2] sm:$0xff]
      %v220 = vld [vmem:[#allocation2 + $0x8] sm:$0xff]
      %v221 = vld [vmem:[%s2] sm:$0x1]
      %v223 = vlaneseq
      %v224 = vshrl.u32 %v223, 7
      %v225 = vsub.s32 0, %v224
      %v226 = vrot.slane %v221, %v225
      %v228 = vadd.f32 %v219, %v226
      %v229 = vadd.f32 %v220, %v226
      %231 = vset.pattern.permute.xlu0 64
      %232 = vperm.xlu0 %231, %v217
      %v233 = vpop.permute.xlu0 %232
      %236 = vset.pattern.permute.xlu0 64
      %237 = vperm.xlu0 %236, %v218
      %v238 = vpop.permute.xlu0 %237
      %v240 = vmul.f32 %v228, %v233
      %v241 = vmul.f32 %v229, %v238
      %242 = vset.pattern.permute.xlu0 0
      %243 = vperm.xlu0 %242, %v217
      %v244 = vpop.permute.xlu0 %243
      %246 = vset.pattern.permute.xlu0 0
      %247 = vperm.xlu0 %246, %v218
      %v248 = vpop.permute.xlu0 %247
      %v250 = vadd.f32 %v240, %v244
      %v251 = vadd.f32 %v241, %v248
      %252 = vst.msk [vmem:[#allocation2] sm:$0xff] %vm211, %v250
      %253 = vst.msk [vmem:[#allocation2 + $0x8] sm:$0xff] %vm211, %v251
    $region25: #{sae_forward.3} parent=1 // pred_fallthru
      _
    // Predicated region
    $region26: #{sae_forward.3} parent=1 // pred_check
      _
    $region27: #{sae_forward.3} parent=1 // pred_check_branch
      %255 = sbr.rel (0) target = $region29
    $region28: #{sae_forward.3} parent=1 // pred_region
      %s257 = ssub.s32 256, 256
      %258 = vsyncadd [#allocation3], %s257
      %s259 = sshll.u32 [#allocation2], 4
      %s260 = int_to_ptr.vmem [resolvable:$true] %s259
      %265 = dma.vmem_to_hbm [thread:$0]  %s260, 256, %s4, [#allocation3], 128, 128, 8
    $region29: #{sae_forward.3} parent=1 // pred_fallthru
      _
    // Predicated region
    $region30: #{sae_forward.3} parent=1 // pred_check
      _
    $region31: #{sae_forward.3} parent=1 // pred_check_branch
      %267 = sbr.rel (0) target = $region33
    $region32: #{sae_forward.3} parent=1 // pred_region
      %268 = dma.done [#allocation3], 256
    $region33: #{sae_forward.3} parent=1 // pred_fallthru
      _
    %269 = vsyncpa [#allocation3], 1

</llo_original>
